<compile_context>
chip_gen: v6e
topology: v6e:2x2x1
jax: 0.10.0
libtpu: 0.0.40
codegen_flags: <defaults>
</compile_context>

<pallas_src>
import functools

import jax
import jax.numpy as jnp
from jax.experimental import pallas as pl
from jax.experimental.pallas import tpu as pltpu

_VMEM_LIMIT = 32 * 1024 * 1024    # explicit scoped-VMEM request (v5e default is only 16 MiB)
_VMEM_BUDGET = 20 * 1024 * 1024   # headroom target used by the tiling heuristics


# ----------------------------------------------------------------------------
# In-kernel group reductions (pure VPU element-wise min/max/add across slabs).
# ----------------------------------------------------------------------------
def _mean_smallest5(v):
    """Mean of the 5 smallest of 9 arrays, element-wise.

    sum(5 smallest) = sum(all 9) - sum(4 largest); the 4 largest are tracked
    with a partial selection network (~20 compare-exchanges vs. 36 for a full
    insertion sort of 9).
    """
    total = v[0]
    for s in v[1:]:
        total = total + s

    t = list(v[:4])                      # running top-4, kept descending

    def ce(i, j):                        # order so t[i] >= t[j]
        hi = jnp.maximum(t[i], t[j])
        lo = jnp.minimum(t[i], t[j])
        t[i], t[j] = hi, lo

    ce(0, 1); ce(2, 3); ce(0, 2); ce(1, 3); ce(1, 2)   # 4-sort, 5 CEs

    for s in v[4:]:
        m = jnp.maximum(s, t[3])         # loser of (s, current 4th) drops out
        t3 = jnp.minimum(t[2], m); c = jnp.maximum(t[2], m)
        t2 = jnp.minimum(t[1], c); c = jnp.maximum(t[1], c)
        t1 = jnp.minimum(t[0], c); t0 = jnp.maximum(t[0], c)
        t = [t0, t1, t2, t3]

    top4 = (t[0] + t[1]) + (t[2] + t[3])
    return (total - top4) * (1.0 / 5.0)


def _reduce_group(slabs, mode):
    if mode == 'min':
        r = slabs[0]
        for s in slabs[1:]:
            r = jnp.minimum(r, s)
        return r
    if mode == 'mean':
        r = slabs[0]
        for s in slabs[1:]:
            r = r + s
        return r * (1.0 / 9.0)
    if mode == 'sort':
        return _mean_smallest5(slabs)
    raise ValueError(f"unknown mode: {mode!r}")


# ----------------------------------------------------------------------------
# Kernel
# ----------------------------------------------------------------------------
def _combined_distance_kernel(x1_ref, x2a_ref, o_ref, *scratch,
                              mode, reduce, n_members):
    # x1_ref : (TB, Nt, D)        raw x1 points (f32)
    # x2a_ref: (TB, Mk, D + 2)    augmented x2  [-2*x2 | 1 | ||x2||^2]
    # o_ref  : (TB, Kt) when reduce=False, (1, 1) resident output otherwise
    TB, Nt, _ = x1_ref.shape
    Mk = x2a_ref.shape[1]

    x1 = x1_ref[...]
    x1n = jnp.sum(x1 * x1, axis=-1, keepdims=True)                 # (TB, Nt, 1)
    a = jnp.concatenate([x1, x1n, jnp.ones_like(x1n)], axis=-1)    # (TB, Nt, D+2)

    # Single MXU contraction yields x1n + x2n - 2<x1,x2> directly (the norm
    # terms ride along as two extra contraction columns -> no (TB,Nt,Mk)-sized
    # broadcast-adds on the VPU and no second MXU push for the x2 norms).
    d = jnp.einsum('bnd,bmd->bnm', a, x2a_ref[...],
                   preferred_element_type=jnp.float32)             # (TB, Nt, Mk)
    d = jnp.maximum(d, 0.0)

    if n_members == 1:
        # mode='mean' shortcut: x2 was pre-averaged per group of 9, so d is
        # already the per-group mean distance.
        r = d                                                      # (TB, Nt, G)
    elif n_members == 9:
        # Member-major layout: group member j is the contiguous lane slab
        # d[:, :, j*G:(j+1)*G]; the reduction is element-wise across slabs.
        G = Mk // 9
        slabs = [d[:, :, j * G:(j + 1) * G] for j in range(9)]
        r = _reduce_group(slabs, mode)                             # (TB, Nt, G)
    else:
        # TODO(synk): generic flat grouping (M % 9 != 0); groups straddle rows
        # so this reshape materializes cross-row relayouts and cannot be N-tiled.
        d9 = d.reshape(TB, (Nt * Mk) // 9, 9)
        r = _reduce_group([d9[..., j] for j in range(9)], mode)

    r = r.reshape(TB, -1)                                          # (TB, Kt), lane-dense

    if reduce:
        acc = scratch[0]                                           # VMEM (1, 1)
        first = jnp.logical_and(pl.program_id(0) == 0, pl.program_id(1) == 0)
        last = jnp.logical_and(pl.program_id(0) == pl.num_programs(0) - 1,
                               pl.program_id(1) == pl.num_programs(1) - 1)

        @pl.when(first)
        def _():
            acc[...] = jnp.zeros_like(acc)

        acc[...] += jnp.sum(r, keepdims=True)

        @pl.when(last)
        def _():
            o_ref[...] = acc[...].astype(o_ref.dtype)
    else:
        o_ref[...] = r.astype(o_ref.dtype)


# ----------------------------------------------------------------------------
# Tiling heuristics
# ----------------------------------------------------------------------------
def _pick_batch_block(B, per_batch_bytes):
    """8-aligned batch block; never 1 for B > 8 (caller pads B to a multiple)."""
    if B <= 8:
        return B
    tb = 8
    while (tb * 2 <= 64 and B % (tb * 2) == 0
           and tb * 2 * per_batch_bytes <= _VMEM_BUDGET // 2):
        tb *= 2
    return tb


def _pick_n_block(N, TB, Mk, Dp, n_members):
    """Largest 8-aligned divisor of N whose f32 distance slab (plus
    double-buffered inputs) fits the VMEM budget, keeping output tiles
    lane-dense (multiples of 128) when tiling is actually needed."""
    def bytes_needed(nt):
        slab = 4 * TB * nt * Mk                       # f32 distance slab
        ins = 2 * 4 * TB * (nt * Dp + Mk * Dp)        # double-buffered inputs
        out = 2 * 4 * TB * ((nt * Mk) // max(n_members, 1))
        return 2 * slab + ins + out                   # slab + temp headroom

    if n_members == 0 or bytes_needed(N) <= _VMEM_BUDGET:
        return N                                      # no tiling (flat path can't tile)
    candidates = [nt for nt in range(8, N, 8)
                  if N % nt == 0 and ((nt * Mk) // n_members) % 128 == 0]
    fitting = [nt for nt in candidates if bytes_needed(nt) <= _VMEM_BUDGET]
    if fitting:
        return max(fitting)
    return min(candidates) if candidates else N


# ----------------------------------------------------------------------------
# Wrapper
# ----------------------------------------------------------------------------
def combined_distance(x1, x2, mode='min', reduce=True, batch_block=None, n_block=None):
    """Pallas implementation of Combined_Distance.forward."""
    if mode not in ('min', 'mean', 'sort'):
        raise ValueError(f"unknown mode: {mode!r}")
    B, N, D = x1.shape
    B2, M, D2 = x2.shape
    assert B == B2 and D == D2
    assert (N * M) % 9 == 0, "N*M must be divisible by 9 (matches .view(B, -1, 9))"
    K = (N * M) // 9
    f32 = jnp.float32
    x1 = x1.astype(f32)
    x2 = x2.astype(f32)

    # ---- x2-side preprocessing (O(B*M*D), tiny vs. the O(B*N*M) kernel) ----
    x2sq = jnp.sum(x2 * x2, axis=-1)                                # (B, M)
    if M % 9 == 0:
        G = M // 9
        if mode == 'mean':
            # mean is linear: pre-average each group of 9 -> the matmul output
            # IS the answer (9x less MXU output / clamp work / VMEM slab).
            x2p = jnp.mean(x2.reshape(B, G, 9, D), axis=2)          # (B, G, D)
            x2b = jnp.mean(x2sq.reshape(B, G, 9), axis=2)           # (B, G)
            n_members = 1
        else:
            # Member-major permutation: gram column j*G + g <- point 9g + j,
            # so each group member is a contiguous lane slab (no stride-9
            # cross-lane gathers through the XLU in the kernel).
            x2p = x2.reshape(B, G, 9, D).transpose(0, 2, 1, 3).reshape(B, 9 * G, D)
            x2b = x2sq.reshape(B, G, 9).transpose(0, 2, 1).reshape(B, 9 * G)
            n_members = 9
    else:
        x2p, x2b, n_members = x2, x2sq, 0                           # generic flat path
    Mk = x2p.shape[1]
    Dp = D + 2
    # Augmented operand so one MXU contraction produces x1n + x2n - 2<x1,x2>.
    x2_aug = jnp.concatenate(
        [-2.0 * x2p, jnp.ones((B, Mk, 1), f32), x2b[:, :, None]], axis=-1)

    # ---- batch / N tiling ---------------------------------------------------
    per_batch_bytes = 4 * (2 * N * Mk + (N + Mk) * Dp)
    TB = batch_block if batch_block is not None else _pick_batch_block(B, per_batch_bytes)
    Bp = -(-B // TB) * TB
    if Bp != B:
        # Zero-padded batches produce all-zero group results, so the global sum
        # (reduce=True) and the sliced output (reduce=False) stay correct.
        x1 = jnp.concatenate([x1, jnp.zeros((Bp - B, N, D), f32)], axis=0)
        x2_aug = jnp.concatenate([x2_aug, jnp.zeros((Bp - B, Mk, Dp), f32)], axis=0)
    Nt = n_block if n_block is not None else _pick_n_block(N, TB, Mk, Dp, n_members)
    assert N % Nt == 0
    grid = (Bp // TB, N // Nt)
    Kt = (Nt * Mk) // n_members if n_members else (Nt * M) // 9

    in_specs = [
        pl.BlockSpec((TB, Nt, D), lambda b, n: (b, n, 0)),
        pl.BlockSpec((TB, Mk, Dp), lambda b, n: (b, 0, 0)),
    ]
    if reduce:
        # Resident (1,1) output + VMEM accumulator: no per-step masked stores
        # or HBM writebacks.  Shared accumulator -> sequential ("arbitrary") grid.
        # TODO(synk): per-core partial sums would let the batch axis stay
        # "parallel" for v7x megacore sharding.
        out_shape = jax.ShapeDtypeStruct((1, 1), f32)
        out_specs = pl.BlockSpec((1, 1), lambda b, n: (0, 0))
        scratch_shapes = [pltpu.VMEM((1, 1), f32)]
        dims = ("arbitrary", "arbitrary")
    else:
        out_shape = jax.ShapeDtypeStruct((Bp, K), f32)
        out_specs = pl.BlockSpec((TB, Kt), lambda b, n: (b, n))
        scratch_shapes = []
        dims = ("parallel", "parallel")

    out = pl.pallas_call(
        functools.partial(_combined_distance_kernel, mode=mode, reduce=reduce,
                          n_members=n_members),
        out_shape=out_shape,
        grid=grid,
        in_specs=in_specs,
        out_specs=out_specs,
        scratch_shapes=scratch_shapes,
        compiler_params=pltpu.CompilerParams(
            dimension_semantics=dims, vmem_limit_bytes=_VMEM_LIMIT),
    )(x1, x2_aug)

    if reduce:
        # TODO(synk): plain f32 running sum; use per-step means / compensated
        # summation if B*K grows large enough for summation error to matter.
        return out[0, 0] / (B * K)
    return out if Bp == B else out[:B]


# ----------------------------------------------------------------------------
# Plain-JAX reference of the PyTorch module, for sanity checks.
# ----------------------------------------------------------------------------
def _reference(x1, x2, mode='min', reduce=True):
    g = jnp.einsum('bnd,bmd->bnm', x1, x2)
    x1n = jnp.sum(x1 * x1, axis=-1)[:, :, None]
    x2n = jnp.sum(x2 * x2, axis=-1)[:, None, :]
    d = jnp.maximum(x1n + x2n - 2.0 * g, 0.0)
    d = d.reshape(x1.shape[0], -1, 9)
    if mode == 'min':
        d = jnp.min(d, axis=-1)
    elif mode == 'mean':
        d = jnp.mean(d, axis=-1)
    elif mode == 'sort':
        d = jnp.mean(jnp.sort(d, axis=-1)[..., :5], axis=-1)
    return jnp.mean(d) if reduce else d


if __name__ == "__main__":
    key = jax.random.PRNGKey(0)
    k1, k2, k3, k4, k5, k6 = jax.random.split(key, 6)

    # Primary shapes: point clouds (B, N, D) vs (B, M, D) with M = 9 candidates.
    B, N, M, D = 2, 16, 9, 8
    x1 = jax.random.normal(k1, (B, N, D), dtype=jnp.float32)
    x2 = jax.random.normal(k2, (B, M, D), dtype=jnp.float32)
    for mode in ('min', 'mean', 'sort'):
        for red in (True, False):
            got = jax.block_until_ready(combined_distance(x1, x2, mode=mode, reduce=red))
            want = _reference(x1, x2, mode, red)
            assert jnp.allclose(got, want, atol=1e-4, rtol=1e-4), (mode, red)

    # Grouped in-row path (M % 9 == 0, M > 9): exercises member-major slabs.
    y1 = jax.random.normal(k3, (2, 8, 8), dtype=jnp.float32)
    y2 = jax.random.normal(k4, (2, 18, 8), dtype=jnp.float32)
    for mode in ('min', 'mean', 'sort'):
        got = jax.block_until_ready(combined_distance(y1, y2, mode=mode, reduce=False))
        assert jnp.allclose(got, _reference(y1, y2, mode, False), atol=1e-4, rtol=1e-4), mode

    # B > 8 and not a multiple of 8: exercises batch padding, multi-step
    # accumulation (reduce=True) and the padded-output slice (reduce=False).
    z1 = jax.random.normal(k5, (10, 16, 8), dtype=jnp.float32)
    z2 = jax.random.normal(k6, (10, 9, 8), dtype=jnp.float32)
    got = jax.block_until_ready(combined_distance(z1, z2, mode='sort', reduce=True))
    assert jnp.allclose(got, _reference(z1, z2, 'sort', True), atol=1e-4, rtol=1e-4)
    got = jax.block_until_ready(combined_distance(z1, z2, mode='min', reduce=False))
    assert jnp.allclose(got, _reference(z1, z2, 'min', False), atol=1e-4, rtol=1e-4)

    print("KERNEL_OK")
</pallas_src>

<mosaic_0001>
module attributes {stable_mosaic.version = 11 : i64} {
  func.func @_combined_distance_kernel(%arg0: i32, %arg1: i32, %arg2: memref<2x16x8xf32, #tpu.memory_space<vmem>>, %arg3: memref<2x9x10xf32, #tpu.memory_space<vmem>>, %arg4: memref<1x1xf32, #tpu.memory_space<vmem>>, %arg5: memref<1x1xf32, #tpu.memory_space<vmem>>) attributes {dimension_semantics = [#tpu.dimension_semantics<arbitrary>, #tpu.dimension_semantics<arbitrary>], iteration_bounds = array<i64: 1, 1>, scalar_prefetch = 0 : i64, scratch_operands = 1 : i64, tpu.core_type = #tpu.core_type<tc>, window_params = [{transform_indices = @transform_0, window_bounds = array<i64: 2, 16, 8>}, {transform_indices = @transform_1, window_bounds = array<i64: 2, 9, 10>}, {pipeline_mode = #tpu.pipeline_mode<synchronous>, transform_indices = @transform_2, window_bounds = array<i64: 1, 1>}]} {
    %c0 = arith.constant 0 : index
    %c0_0 = arith.constant 0 : index
    %c0_1 = arith.constant 0 : index
    %0 = vector.load %arg2[%c0, %c0_0, %c0_1] : memref<2x16x8xf32, #tpu.memory_space<vmem>>, vector<2x16x8xf32>
    %1 = arith.mulf %0, %0 : vector<2x16x8xf32>
    %cst = arith.constant dense<0.000000e+00> : vector<2x16xf32>
    %2 = vector.multi_reduction <add>, %1, %cst [2] : vector<2x16x8xf32> to vector<2x16xf32>
    %3 = vector.shape_cast %2 : vector<2x16xf32> to vector<2x16x1xf32>
    %cst_2 = arith.constant 1.000000e+00 : f32
    %4 = vector.broadcast %cst_2 : f32 to vector<2x16x1xf32>
    %5 = tpu.concatenate %0, %3, %4 in 2 : vector<2x16x8xf32>, vector<2x16x1xf32>, vector<2x16x1xf32> -> vector<2x16x10xf32>
    %c0_3 = arith.constant 0 : index
    %c0_4 = arith.constant 0 : index
    %c0_5 = arith.constant 0 : index
    %6 = vector.load %arg3[%c0_3, %c0_4, %c0_5] : memref<2x9x10xf32, #tpu.memory_space<vmem>>, vector<2x9x10xf32>
    "tpu.trace_start"() <{level = 10 : i32, message = "bnd,bmd->bnm"}> : () -> ()
    %cst_6 = arith.constant dense<0.000000e+00> : vector<2x16x9xf32>
    %7 = tpu.matmul %5, %6, %cst_6 {dimension_numbers = #tpu.dot_dimension_numbers<[2], [2], [1], [1], [0, 0, 0, 1, 1, 1], [0], [0]>} : vector<2x16x10xf32>, vector<2x9x10xf32>, vector<2x16x9xf32> -> vector<2x16x9xf32>
    "tpu.trace_stop"() : () -> ()
    %cst_7 = arith.constant 0.000000e+00 : f32
    %8 = vector.broadcast %cst_7 : f32 to vector<2x16x9xf32>
    %9 = arith.maximumf %7, %8 : vector<2x16x9xf32>
    %10 = vector.extract_strided_slice %9 {offsets = [0, 0, 0], sizes = [2, 16, 1], strides = [1, 1, 1]} : vector<2x16x9xf32> to vector<2x16x1xf32>
    %11 = vector.extract_strided_slice %9 {offsets = [0, 0, 1], sizes = [2, 16, 1], strides = [1, 1, 1]} : vector<2x16x9xf32> to vector<2x16x1xf32>
    %12 = vector.extract_strided_slice %9 {offsets = [0, 0, 2], sizes = [2, 16, 1], strides = [1, 1, 1]} : vector<2x16x9xf32> to vector<2x16x1xf32>
    %13 = vector.extract_strided_slice %9 {offsets = [0, 0, 3], sizes = [2, 16, 1], strides = [1, 1, 1]} : vector<2x16x9xf32> to vector<2x16x1xf32>
    %14 = vector.extract_strided_slice %9 {offsets = [0, 0, 4], sizes = [2, 16, 1], strides = [1, 1, 1]} : vector<2x16x9xf32> to vector<2x16x1xf32>
    %15 = vector.extract_strided_slice %9 {offsets = [0, 0, 5], sizes = [2, 16, 1], strides = [1, 1, 1]} : vector<2x16x9xf32> to vector<2x16x1xf32>
    %16 = vector.extract_strided_slice %9 {offsets = [0, 0, 6], sizes = [2, 16, 1], strides = [1, 1, 1]} : vector<2x16x9xf32> to vector<2x16x1xf32>
    %17 = vector.extract_strided_slice %9 {offsets = [0, 0, 7], sizes = [2, 16, 1], strides = [1, 1, 1]} : vector<2x16x9xf32> to vector<2x16x1xf32>
    %18 = vector.extract_strided_slice %9 {offsets = [0, 0, 8], sizes = [2, 16, 1], strides = [1, 1, 1]} : vector<2x16x9xf32> to vector<2x16x1xf32>
    %19 = arith.minimumf %10, %11 : vector<2x16x1xf32>
    %20 = arith.minimumf %19, %12 : vector<2x16x1xf32>
    %21 = arith.minimumf %20, %13 : vector<2x16x1xf32>
    %22 = arith.minimumf %21, %14 : vector<2x16x1xf32>
    %23 = arith.minimumf %22, %15 : vector<2x16x1xf32>
    %24 = arith.minimumf %23, %16 : vector<2x16x1xf32>
    %25 = arith.minimumf %24, %17 : vector<2x16x1xf32>
    %26 = arith.minimumf %25, %18 : vector<2x16x1xf32>
    %27 = vector.shape_cast %26 : vector<2x16x1xf32> to vector<2x16xf32>
    %c0_i32 = arith.constant 0 : i32
    %28 = arith.cmpi eq, %arg0, %c0_i32 : i32
    %c0_i32_8 = arith.constant 0 : i32
    %29 = arith.cmpi eq, %arg1, %c0_i32_8 : i32
    %30 = arith.andi %28, %29 : i1
    %c0_i32_9 = arith.constant 0 : i32
    %31 = arith.cmpi eq, %arg0, %c0_i32_9 : i32
    %c0_i32_10 = arith.constant 0 : i32
    %32 = arith.cmpi eq, %arg1, %c0_i32_10 : i32
    %33 = arith.andi %31, %32 : i1
    %34 = arith.extui %30 : i1 to i32
    %c0_i32_11 = arith.constant 0 : i32
    %35 = arith.cmpi ne, %34, %c0_i32_11 : i32
    scf.if %35 {
      %cst_18 = arith.constant 0.000000e+00 : f32
      %46 = vector.broadcast %cst_18 : f32 to vector<1x1xf32>
      %c0_19 = arith.constant 0 : index
      %c0_20 = arith.constant 0 : index
      %47 = vector.load %arg5[%c0_19, %c0_20] : memref<1x1xf32, #tpu.memory_space<vmem>>, vector<1x1xf32>
      tpu.vector_store %arg5[%c0_19, %c0_20], %46 {strides = array<i32>} : memref<1x1xf32, #tpu.memory_space<vmem>>, vector<1x1xf32>,
    } else {
    }
    %c0_12 = arith.constant 0 : index
    %c0_13 = arith.constant 0 : index
    %36 = vector.load %arg5[%c0_12, %c0_13] : memref<1x1xf32, #tpu.memory_space<vmem>>, vector<1x1xf32>
    %37 = vector.shape_cast %27 : vector<2x16xf32> to vector<1x2x16xf32>
    %cst_14 = arith.constant dense<0.000000e+00> : vector<1xf32>
    %38 = vector.multi_reduction <add>, %37, %cst_14 [1, 2] : vector<1x2x16xf32> to vector<1xf32>
    %39 = vector.shape_cast %38 : vector<1xf32> to vector<1x1x1xf32>
    %40 = vector.extract %39[0, 0, 0] : f32 from vector<1x1x1xf32>
    %41 = vector.broadcast %40 : f32 to vector<1x1xf32>
    %42 = arith.addf %36, %41 : vector<1x1xf32>
    %c0_15 = arith.constant 0 : index
    %c0_16 = arith.constant 0 : index
    %43 = vector.load %arg5[%c0_15, %c0_16] : memref<1x1xf32, #tpu.memory_space<vmem>>, vector<1x1xf32>
    tpu.vector_store %arg5[%c0_15, %c0_16], %42 {strides = array<i32>} : memref<1x1xf32, #tpu.memory_space<vmem>>, vector<1x1xf32>,
    %44 = arith.extui %33 : i1 to i32
    %c0_i32_17 = arith.constant 0 : i32
    %45 = arith.cmpi ne, %44, %c0_i32_17 : i32
    scf.if %45 {
      %c0_18 = arith.constant 0 : index
      %c0_19 = arith.constant 0 : index
      %46 = vector.load %arg5[%c0_18, %c0_19] : memref<1x1xf32, #tpu.memory_space<vmem>>, vector<1x1xf32>
      %c0_20 = arith.constant 0 : index
      %c0_21 = arith.constant 0 : index
      %47 = vector.load %arg4[%c0_20, %c0_21] : memref<1x1xf32, #tpu.memory_space<vmem>>, vector<1x1xf32>
      tpu.vector_store %arg4[%c0_20, %c0_21], %46 {strides = array<i32>} : memref<1x1xf32, #tpu.memory_space<vmem>>, vector<1x1xf32>,
    } else {
    }
    return
  }
  func.func @transform_0(%arg0: i32, %arg1: i32) -> (i32, i32, i32) {
    %c0_i32 = arith.constant 0 : i32
    %c0_i32_0 = arith.constant 0 : i32
    return %arg0, %arg1, %c0_i32 : i32, i32, i32
  }
  func.func @transform_1(%arg0: i32, %arg1: i32) -> (i32, i32, i32) {
    %c0_i32 = arith.constant 0 : i32
    %c0_i32_0 = arith.constant 0 : i32
    %c0_i32_1 = arith.constant 0 : i32
    return %arg0, %c0_i32, %c0_i32_0 : i32, i32, i32
  }
  func.func @transform_2(%arg0: i32, %arg1: i32) -> (i32, i32) {
    %c0_i32 = arith.constant 0 : i32
    %c0_i32_0 = arith.constant 0 : i32
    %c0_i32_1 = arith.constant 0 : i32
    return %c0_i32, %c0_i32_0 : i32, i32
  }
}

</mosaic_0001>

<llo_original>
// kernel: tpu_custom_call.1
$region0: #{tpu_custom_call.1}
  #allocation0 [shape = 'u32[]', space=smem, size = 0x4, offset = 0x4, fixed_abs, tag = 'smem constant byte address 0x4 - core index']
  #allocation1 [shape = 'u32[144,128]{1,0:T(1,128)}', space=vmem, size = 0x12000, scoped, tag = 'internal scratch']
  #allocation2 [shape = 'f32[1,1]{1,0:T(1,128)}', space=vmem, size = 0x200, scoped, tag = 'scratch operand']
  %s0 = inlined_call_operand.vmem [shape: f32[2,16,8], index: 0, kind: input, shape index: {}]
  %s1 = inlined_call_operand.vmem [shape: f32[2,9,10], index: 1, kind: input, shape index: {}]
  %s2 = inlined_call_operand.hbm [shape: f32[1,1], index: 2, kind: output, shape index: {}]
  %s3 = sld [smem:[#allocation0]]
  $region26: #{tpu_custom_call.1} parent=0
    _
  %s5 = ssub.s32 1, %s3
  %s6 = scalar_select 0, %s5, %s3
  $region1: #{tpu_custom_call.1} parent=0
    #allocation3 [shape = 'u8[512]{0}', space=vmem, size = 0x400, scoped, tag = 'output window, operand 0, single buffered']
    #allocation4 [shape = 's32[1]{0}', space=sflag, size = 0x4, scoped, tag = 'scoped memory for tpu_custom_call.1']
    %7 = vsyncpa [#allocation4], 0
    // Predicated region
    $region2: #{tpu_custom_call.1} parent=1 // pred_check
      _
    $region3: #{tpu_custom_call.1} parent=1 // pred_check_branch
      %9 = sbr.rel (0) target = $region5
    $region4: #{tpu_custom_call.1} parent=1 // pred_region
      _
    $region5: #{tpu_custom_call.1} parent=1 // pred_fallthru
      _
    // Predicated region
    $region6: #{tpu_custom_call.1} parent=1 // pred_check
      _
    $region7: #{tpu_custom_call.1} parent=1 // pred_check_branch
      %11 = sbr.rel (0) target = $region9
    $region8: #{tpu_custom_call.1} parent=1 // pred_region
      _
    $region9: #{tpu_custom_call.1} parent=1 // pred_fallthru
      _
    %v12 = vld [vmem:[%s0] sm:$0xff]
    %v13 = vld [vmem:[%s0 + $0x8] sm:$0xff]
    %v14 = vld [vmem:[%s0 + $0x10] sm:$0xff]
    %v15 = vld [vmem:[%s0 + $0x18] sm:$0xff]
    %v16 = vmul.f32 %v12, %v12
    %v17 = vmul.f32 %v13, %v13
    %v18 = vmul.f32 %v14, %v14
    %v19 = vmul.f32 %v15, %v15
    %vm20 = vcmask 64512
    %v21 = vsel %vm20, %v16, 0.0
    %22 = vadd.xlane.f32.xlu0 %v21
    %v23 = vpop.xlane.xlu0 %22
    %v24 = vsel %vm20, %v17, 0.0
    %25 = vadd.xlane.f32.xlu0 %v24
    %v26 = vpop.xlane.xlu0 %25
    %v27 = vsel %vm20, %v18, 0.0
    %28 = vadd.xlane.f32.xlu0 %v27
    %v29 = vpop.xlane.xlu0 %28
    %v30 = vsel %vm20, %v19, 0.0
    %31 = vadd.xlane.f32.xlu0 %v30
    %v32 = vpop.xlane.xlu0 %31
    %v33 = vsel %vm20, %v12, %v23
    %v34 = vsel %vm20, %v13, %v26
    %v35 = vsel %vm20, %v14, %v29
    %v36 = vsel %vm20, %v15, %v32
    %vm37 = vcmask 72704
    %v38 = vsel %vm37, %v33, 1.0
    %v39 = vsel %vm37, %v34, 1.0
    %v40 = vsel %vm37, %v35, 1.0
    %v41 = vsel %vm37, %v36, 1.0
    %v42 = vld [vmem:[%s1] sm:$0xff]
    %v43 = vld [vmem:[%s1 + $0x8] sm:$0x1]
    %v44 = vld [vmem:[%s1 + $0x10] sm:$0xff]
    %v45 = vld [vmem:[%s1 + $0x18] sm:$0x1]
    %vm46 = vcmask 80896
    %v48 = vsel %vm46, %v38, 0
    %v51 = vsel %vm46, %v39, 0
    %v54 = vsel %vm46, %v42, 0
    %v57 = vsel %vm46, %v43, 0
    %59 = vmatprep.subr.mxu0 0.0
    %60 = vmatpush1.xpose.msra.mxu0 0.0
    %61 = vmatprep.subr.mxu0 0.0
    %62 = vmatpush1.xpose.msra.mxu0 0.0
    %63 = vmatprep.subr.mxu0 0.0
    %64 = vmatpush1.xpose.msra.mxu0 0.0
    %65 = vmatprep.subr.mxu0 0.0
    %66 = vmatpush1.xpose.msra.mxu0 0.0
    %67 = vmatprep.subr.mxu0 0.0
    %68 = vmatpush1.xpose.msra.mxu0 0.0
    %69 = vmatprep.subr.mxu0 0.0
    %70 = vmatpush1.xpose.msra.mxu0 0.0
    %71 = vmatprep.subr.mxu0 0.0
    %72 = vmatpush1.xpose.msra.mxu0 0.0
    %73 = vmatprep.subr.mxu0 0.0
    %74 = vmatpush1.xpose.msra.mxu0 0.0
    %75 = vmatprep.subr.mxu0 0.0
    %76 = vmatpush1.xpose.msra.mxu0 0.0
    %77 = vmatprep.subr.mxu0 0.0
    %78 = vmatpush1.xpose.msra.mxu0 0.0
    %79 = vmatprep.subr.mxu0 0.0
    %80 = vmatpush1.xpose.msra.mxu0 0.0
    %81 = vmatprep.subr.mxu0 0.0
    %82 = vmatpush1.xpose.msra.mxu0 0.0
    %83 = vmatprep.subr.mxu0 0.0
    %84 = vmatpush1.xpose.msra.mxu0 0.0
    %85 = vmatprep.subr.mxu0 0.0
    %86 = vmatpush1.xpose.msra.mxu0 0.0
    %87 = vmatprep.subr.mxu0 0.0
    %88 = vmatpush1.xpose.msra.mxu0 %v57
    %89 = vmatprep.subr.mxu0 0.0
    %90 = vmatpush1.xpose.msra.mxu0 %v54
    %91 = vmatprep.subr.mxu0 0.0
    %92 = vmatpush2.xpose.msra.mxu0 0.0
    %93 = vmatprep.subr.mxu0 0.0
    %94 = vmatpush2.xpose.msra.mxu0 0.0
    %95 = vmatprep.subr.mxu0 0.0
    %96 = vmatpush2.xpose.msra.mxu0 0.0
    %97 = vmatprep.subr.mxu0 0.0
    %98 = vmatpush2.xpose.msra.mxu0 0.0
    %99 = vmatprep.subr.mxu0 0.0
    %100 = vmatpush2.xpose.msra.mxu0 0.0
    %101 = vmatprep.subr.mxu0 0.0
    %102 = vmatpush2.xpose.msra.mxu0 0.0
    %103 = vmatprep.subr.mxu0 0.0
    %104 = vmatpush2.xpose.msra.mxu0 0.0
    %105 = vmatprep.subr.mxu0 0.0
    %106 = vmatpush2.xpose.msra.mxu0 0.0
    %107 = vmatprep.subr.mxu0 0.0
    %108 = vmatpush2.xpose.msra.mxu0 0.0
    %109 = vmatprep.subr.mxu0 0.0
    %110 = vmatpush2.xpose.msra.mxu0 0.0
    %111 = vmatprep.subr.mxu0 0.0
    %112 = vmatpush2.xpose.msra.mxu0 0.0
    %113 = vmatprep.subr.mxu0 0.0
    %114 = vmatpush2.xpose.msra.mxu0 0.0
    %115 = vmatprep.subr.mxu0 0.0
    %116 = vmatpush2.xpose.msra.mxu0 0.0
    %117 = vmatprep.subr.mxu0 0.0
    %118 = vmatpush2.xpose.msra.mxu0 0.0
    %119 = vmatprep.subr.mxu0 0.0
    %120 = vmatpush2.xpose.msra.mxu0 0.0
    %121 = vmatprep.subr.mxu0 0.0
    %122 = vmatpush2.xpose.msra.mxu0 0.0
    %123 = vmatprep.mubr.f32.mxu0 0.0
    %124 = vmatmul.mubr.f32.gmra.mxu0 %v48
    %v125 = vpop.f32.mrf.mxu0
    %v126 = vadd.f32 0.0, %v125
    %v127 = vpop.f32.mrf.mxu0
    %128 = vmatprep.mubr.f32.mxu0 0.0
    %129 = vmatmul.mubr.f32.gmra.mxu0 %v51
    %v130 = vpop.f32.mrf.mxu0
    %v131 = vadd.f32 0.0, %v130
    %v132 = vpop.f32.mrf.mxu0
    %133 = vdwg.mxu0
    %v135 = vsel %vm46, %v40, 0
    %v138 = vsel %vm46, %v41, 0
    %v141 = vsel %vm46, %v44, 0
    %v144 = vsel %vm46, %v45, 0
    %146 = vmatprep.subr.mxu0 0.0
    %147 = vmatpush1.xpose.msra.mxu0 0.0
    %148 = vmatprep.subr.mxu0 0.0
    %149 = vmatpush1.xpose.msra.mxu0 0.0
    %150 = vmatprep.subr.mxu0 0.0
    %151 = vmatpush1.xpose.msra.mxu0 0.0
    %152 = vmatprep.subr.mxu0 0.0
    %153 = vmatpush1.xpose.msra.mxu0 0.0
    %154 = vmatprep.subr.mxu0 0.0
    %155 = vmatpush1.xpose.msra.mxu0 0.0
    %156 = vmatprep.subr.mxu0 0.0
    %157 = vmatpush1.xpose.msra.mxu0 0.0
    %158 = vmatprep.subr.mxu0 0.0
    %159 = vmatpush1.xpose.msra.mxu0 0.0
    %160 = vmatprep.subr.mxu0 0.0
    %161 = vmatpush1.xpose.msra.mxu0 0.0
    %162 = vmatprep.subr.mxu0 0.0
    %163 = vmatpush1.xpose.msra.mxu0 0.0
    %164 = vmatprep.subr.mxu0 0.0
    %165 = vmatpush1.xpose.msra.mxu0 0.0
    %166 = vmatprep.subr.mxu0 0.0
    %167 = vmatpush1.xpose.msra.mxu0 0.0
    %168 = vmatprep.subr.mxu0 0.0
    %169 = vmatpush1.xpose.msra.mxu0 0.0
    %170 = vmatprep.subr.mxu0 0.0
    %171 = vmatpush1.xpose.msra.mxu0 0.0
    %172 = vmatprep.subr.mxu0 0.0
    %173 = vmatpush1.xpose.msra.mxu0 0.0
    %174 = vmatprep.subr.mxu0 0.0
    %175 = vmatpush1.xpose.msra.mxu0 %v144
    %176 = vmatprep.subr.mxu0 0.0
    %177 = vmatpush1.xpose.msra.mxu0 %v141
    %178 = vmatprep.subr.mxu0 0.0
    %179 = vmatpush2.xpose.msra.mxu0 0.0
    %180 = vmatprep.subr.mxu0 0.0
    %181 = vmatpush2.xpose.msra.mxu0 0.0
    %182 = vmatprep.subr.mxu0 0.0
    %183 = vmatpush2.xpose.msra.mxu0 0.0
    %184 = vmatprep.subr.mxu0 0.0
    %185 = vmatpush2.xpose.msra.mxu0 0.0
    %186 = vmatprep.subr.mxu0 0.0
    %187 = vmatpush2.xpose.msra.mxu0 0.0
    %188 = vmatprep.subr.mxu0 0.0
    %189 = vmatpush2.xpose.msra.mxu0 0.0
    %190 = vmatprep.subr.mxu0 0.0
    %191 = vmatpush2.xpose.msra.mxu0 0.0
    %192 = vmatprep.subr.mxu0 0.0
    %193 = vmatpush2.xpose.msra.mxu0 0.0
    %194 = vmatprep.subr.mxu0 0.0
    %195 = vmatpush2.xpose.msra.mxu0 0.0
    %196 = vmatprep.subr.mxu0 0.0
    %197 = vmatpush2.xpose.msra.mxu0 0.0
    %198 = vmatprep.subr.mxu0 0.0
    %199 = vmatpush2.xpose.msra.mxu0 0.0
    %200 = vmatprep.subr.mxu0 0.0
    %201 = vmatpush2.xpose.msra.mxu0 0.0
    %202 = vmatprep.subr.mxu0 0.0
    %203 = vmatpush2.xpose.msra.mxu0 0.0
    %204 = vmatprep.subr.mxu0 0.0
    %205 = vmatpush2.xpose.msra.mxu0 0.0
    %206 = vmatprep.subr.mxu0 0.0
    %207 = vmatpush2.xpose.msra.mxu0 0.0
    %208 = vmatprep.subr.mxu0 0.0
    %209 = vmatpush2.xpose.msra.mxu0 0.0
    %210 = vmatprep.mubr.f32.mxu0 0.0
    %211 = vmatmul.mubr.f32.gmra.mxu0 %v135
    %v212 = vpop.f32.mrf.mxu0
    %v213 = vadd.f32 0.0, %v212
    %v214 = vpop.f32.mrf.mxu0
    %215 = vmatprep.mubr.f32.mxu0 0.0
    %216 = vmatmul.mubr.f32.gmra.mxu0 %v138
    %v217 = vpop.f32.mrf.mxu0
    %v218 = vadd.f32 0.0, %v217
    %v219 = vpop.f32.mrf.mxu0
    %220 = vdwg.mxu0
    %v221 = vmax.f32 %v126, 0.0
    %v222 = vmax.f32 %v131, 0.0
    %v223 = vmax.f32 %v213, 0.0
    %v224 = vmax.f32 %v218, 0.0
    %229 = vrot.lane.b32.xlu0 %v221, 127
    %v230 = vpop.permute.xlu0 %229
    %231 = vrot.lane.b32.xlu0 %v222, 127
    %v232 = vpop.permute.xlu0 %231
    %233 = vrot.lane.b32.xlu0 %v223, 127
    %v234 = vpop.permute.xlu0 %233
    %235 = vrot.lane.b32.xlu0 %v224, 127
    %v236 = vpop.permute.xlu0 %235
    %v241 = vmin.f32 %v221, %v230
    %v242 = vmin.f32 %v222, %v232
    %v243 = vmin.f32 %v223, %v234
    %v244 = vmin.f32 %v224, %v236
    %245 = vrot.lane.b32.xlu0 %v221, 126
    %v246 = vpop.permute.xlu0 %245
    %247 = vrot.lane.b32.xlu0 %v222, 126
    %v248 = vpop.permute.xlu0 %247
    %249 = vrot.lane.b32.xlu0 %v223, 126
    %v250 = vpop.permute.xlu0 %249
    %251 = vrot.lane.b32.xlu0 %v224, 126
    %v252 = vpop.permute.xlu0 %251
    %v257 = vmin.f32 %v241, %v246
    %v258 = vmin.f32 %v242, %v248
    %v259 = vmin.f32 %v243, %v250
    %v260 = vmin.f32 %v244, %v252
    %261 = vrot.lane.b32.xlu0 %v221, 125
    %v262 = vpop.permute.xlu0 %261
    %263 = vrot.lane.b32.xlu0 %v222, 125
    %v264 = vpop.permute.xlu0 %263
    %265 = vrot.lane.b32.xlu0 %v223, 125
    %v266 = vpop.permute.xlu0 %265
    %267 = vrot.lane.b32.xlu0 %v224, 125
    %v268 = vpop.permute.xlu0 %267
    %v273 = vmin.f32 %v257, %v262
    %v274 = vmin.f32 %v258, %v264
    %v275 = vmin.f32 %v259, %v266
    %v276 = vmin.f32 %v260, %v268
    %277 = vrot.lane.b32.xlu0 %v221, 124
    %v278 = vpop.permute.xlu0 %277
    %279 = vrot.lane.b32.xlu0 %v222, 124
    %v280 = vpop.permute.xlu0 %279
    %281 = vrot.lane.b32.xlu0 %v223, 124
    %v282 = vpop.permute.xlu0 %281
    %283 = vrot.lane.b32.xlu0 %v224, 124
    %v284 = vpop.permute.xlu0 %283
    %v289 = vmin.f32 %v273, %v278
    %v290 = vmin.f32 %v274, %v280
    %v291 = vmin.f32 %v275, %v282
    %v292 = vmin.f32 %v276, %v284
    %293 = vrot.lane.b32.xlu0 %v221, 123
    %v294 = vpop.permute.xlu0 %293
    %295 = vrot.lane.b32.xlu0 %v222, 123
    %v296 = vpop.permute.xlu0 %295
    %297 = vrot.lane.b32.xlu0 %v223, 123
    %v298 = vpop.permute.xlu0 %297
    %299 = vrot.lane.b32.xlu0 %v224, 123
    %v300 = vpop.permute.xlu0 %299
    %v305 = vmin.f32 %v289, %v294
    %v306 = vmin.f32 %v290, %v296
    %v307 = vmin.f32 %v291, %v298
    %v308 = vmin.f32 %v292, %v300
    %309 = vrot.lane.b32.xlu0 %v221, 122
    %v310 = vpop.permute.xlu0 %309
    %311 = vrot.lane.b32.xlu0 %v222, 122
    %v312 = vpop.permute.xlu0 %311
    %313 = vrot.lane.b32.xlu0 %v223, 122
    %v314 = vpop.permute.xlu0 %313
    %315 = vrot.lane.b32.xlu0 %v224, 122
    %v316 = vpop.permute.xlu0 %315
    %v321 = vmin.f32 %v305, %v310
    %v322 = vmin.f32 %v306, %v312
    %v323 = vmin.f32 %v307, %v314
    %v324 = vmin.f32 %v308, %v316
    %325 = vrot.lane.b32.xlu0 %v221, 121
    %v326 = vpop.permute.xlu0 %325
    %327 = vrot.lane.b32.xlu0 %v222, 121
    %v328 = vpop.permute.xlu0 %327
    %329 = vrot.lane.b32.xlu0 %v223, 121
    %v330 = vpop.permute.xlu0 %329
    %331 = vrot.lane.b32.xlu0 %v224, 121
    %v332 = vpop.permute.xlu0 %331
    %v337 = vmin.f32 %v321, %v326
    %v338 = vmin.f32 %v322, %v328
    %v339 = vmin.f32 %v323, %v330
    %v340 = vmin.f32 %v324, %v332
    %341 = vrot.lane.b32.xlu0 %v221, 120
    %v342 = vpop.permute.xlu0 %341
    %343 = vrot.lane.b32.xlu0 %v222, 120
    %v344 = vpop.permute.xlu0 %343
    %345 = vrot.lane.b32.xlu0 %v223, 120
    %v346 = vpop.permute.xlu0 %345
    %347 = vrot.lane.b32.xlu0 %v224, 120
    %v348 = vpop.permute.xlu0 %347
    %v353 = vmin.f32 %v337, %v342
    %v354 = vmin.f32 %v338, %v344
    %v355 = vmin.f32 %v339, %v346
    %v356 = vmin.f32 %v340, %v348
    %p357 = scmp.eq.s32.totalorder 0, 0
    %p358 = scmp.eq.s32.totalorder 0, 0
    %p359 = pnand %p357, %p358
    %p360 = pneg %p359
    // Predicated region
    $region10: #{tpu_custom_call.1} parent=1 // pred_check
      _
    $region11: #{tpu_custom_call.1} parent=1 // pred_check_branch
      %362 = sbr.rel (%p359) target = $region13
    $region12: #{tpu_custom_call.1} parent=1 // pred_region
      %vm363 = vcmask 0
      %364 = vst.msk [vmem:[#allocation2] sm:$0x1] %vm363, 0.0
    $region13: #{tpu_custom_call.1} parent=1 // pred_fallthru
      _
    %v365 = vld [vmem:[#allocation2] sm:$0x1]
    %370 = vset.pattern.permute.xlu0 0
    %371 = vperm.xlu0 %370, %v353
    %v372 = vpop.permute.xlu0 %371
    %373 = vset.pattern.permute.xlu0 0
    %374 = vperm.xlu0 %373, %v354
    %v375 = vpop.permute.xlu0 %374
    %376 = vset.pattern.permute.xlu0 0
    %377 = vperm.xlu0 %376, %v355
    %v378 = vpop.permute.xlu0 %377
    %379 = vset.pattern.permute.xlu0 0
    %380 = vperm.xlu0 %379, %v356
    %v381 = vpop.permute.xlu0 %380
    %v382 = vlaneseq
    %v383 = vand.u32 %v382, 127
    %v384 = vlaneseq
    %v385 = vshrl.u32 %v384, 7
    %v386 = vsub.s32 %v383, %v385
    %v387 = vrot.slane %v372, %v386
    %v388 = vadd.s32 %v383, 4294967288
    %v389 = vlaneseq
    %v390 = vshrl.u32 %v389, 7
    %v391 = vsub.s32 %v388, %v390
    %v392 = vrot.slane %v375, %v391
    %vm393 = vcmask 130112
    %v394 = vsel %vm393, %v392, %v387
    %v395 = vlaneseq
    %v396 = vshrl.u32 %v395, 7
    %v397 = vsub.s32 %v383, %v396
    %v398 = vrot.slane %v378, %v397
    %v399 = vlaneseq
    %v400 = vshrl.u32 %v399, 7
    %v401 = vsub.s32 %v388, %v400
    %v402 = vrot.slane %v381, %v401
    %v403 = vsel %vm393, %v402, %v398
    %vm404 = vcmask 1041409
    %v405 = vsel %vm404, %v403, %v394
    %vm407 = vcmask 123904
    %v408 = vsel %vm407, %v405, 0.0
    %409 = vadd.xlane.f32.xlu0 %v408
    %v410 = vpop.xlane.xlu0 %409
    %v411 = vrot.slane %v410, 4
    %v412 = vadd.f32 %v410, %v411
    %v413 = vrot.slane %v412, 2
    %v414 = vadd.f32 %v412, %v413
    %v415 = vrot.slane %v414, 1
    %v416 = vadd.f32 %v414, %v415
    %s417 = vtos %v416
    %v418 = vstv %s417
    %v419 = vadd.f32 %v365, %v418
    %vm420 = vcmask 0
    %421 = vst.msk [vmem:[#allocation2] sm:$0x1] %vm420, %v419
    // Predicated region
    $region14: #{tpu_custom_call.1} parent=1 // pred_check
      _
    $region15: #{tpu_custom_call.1} parent=1 // pred_check_branch
      %423 = sbr.rel (%p359) target = $region17
    $region16: #{tpu_custom_call.1} parent=1 // pred_region
      %v424 = vld [vmem:[#allocation2] sm:$0x1]
      %425 = vst.msk [vmem:[#allocation3] sm:$0x1] %vm420, %v424
    $region17: #{tpu_custom_call.1} parent=1 // pred_fallthru
      _
    // Predicated region
    $region18: #{tpu_custom_call.1} parent=1 // pred_check
      _
    $region19: #{tpu_custom_call.1} parent=1 // pred_check_branch
      %427 = sbr.rel (0) target = $region21
    $region20: #{tpu_custom_call.1} parent=1 // pred_region
      %s429 = ssub.s32 16, 16
      %430 = vsyncadd [#allocation4], %s429
      %s432 = sshll.u32 [#allocation3], 4
      %s433 = int_to_ptr.vmem [resolvable:$true] %s432
      %435 = dma.vmem_to_hbm [thread:$0]  %s433, 16, %s2, [#allocation4]
    $region21: #{tpu_custom_call.1} parent=1 // pred_fallthru
      _
    // Predicated region
    $region22: #{tpu_custom_call.1} parent=1 // pred_check
      _
    $region23: #{tpu_custom_call.1} parent=1 // pred_check_branch
      %437 = sbr.rel (0) target = $region25
    $region24: #{tpu_custom_call.1} parent=1 // pred_region
      %438 = dma.done [#allocation4], 16
    $region25: #{tpu_custom_call.1} parent=1 // pred_fallthru
      _
    %439 = vsyncpa [#allocation4], 1

</llo_original>
